<compile_context>
chip_gen: v7x
topology: tpu7x:2x2x1
jax: 0.10.0
libtpu: 0.0.40
codegen_flags: <defaults>
</compile_context>

<pallas_src>
import math

import jax
import jax.numpy as jnp
from jax.experimental import pallas as pl
from jax.experimental.pallas import tpu as pltpu


def _encoding_kernel(w_ref, x_ref, o_ref):
    # Elementwise hot path: scale (VPU) -> tanh (EUP) -> scale by pi (VPU).
    # w_ref is (1, C) and broadcasts over the sublane (row) axis.
    o_ref[...] = jnp.tanh(w_ref[...] * x_ref[...]) * jnp.pi


def encoding_layer(x, weights, *, target_lanes=512, tile_rows=512):
    """out = tanh(weights * x) * pi via a lane-dense Pallas TPU kernel.

    x:       (batch, state_dim) float32
    weights: (state_dim,)       float32
    """
    batch, state_dim = x.shape
    total = batch * state_dim
    dtype = x.dtype

    # Lane width: multiple of 128 (full vreg lanes) AND of state_dim so the
    # row-major flattening keeps weights periodic along the lane axis.
    lane = math.lcm(128, state_dim)
    C = lane * max(1, target_lanes // lane)

    # Row tiling: TB is a multiple of 8 (sublane rule); rows padded to TB.
    rows = -(-total // C)
    if rows >= tile_rows:
        TB = tile_rows
    else:
        TB = -(-rows // 8) * 8
    rows_padded = -(-rows // TB) * TB
    grid = rows_padded // TB

    # Flatten + zero-pad x into the lane-dense slab (padding is harmless:
    # tanh(w*0)*pi = 0 and it is sliced off below).
    flat = x.reshape(-1)
    flat = jnp.pad(flat, (0, rows_padded * C - total))
    x2 = flat.reshape(rows_padded, C)

    # Pre-tile weights into one (1, C) row; constant block index across grid.
    w_row = jnp.tile(weights.astype(dtype), C // state_dim).reshape(1, C)

    out2 = pl.pallas_call(
        _encoding_kernel,
        out_shape=jax.ShapeDtypeStruct((rows_padded, C), dtype),
        grid_spec=pltpu.PrefetchScalarGridSpec(
            num_scalar_prefetch=0,
            grid=(grid,),
            in_specs=[
                pl.BlockSpec((1, C), lambda i: (0, 0)),    # weights, resident
                pl.BlockSpec((TB, C), lambda i: (i, 0)),   # x tile
            ],
            out_specs=pl.BlockSpec((TB, C), lambda i: (i, 0)),
        ),
        compiler_params=pltpu.CompilerParams(
            dimension_semantics=("parallel",),
        ),
    )(w_row, x2)

    return out2.reshape(-1)[:total].reshape(batch, state_dim)


def _reference(x, weights):
    return jnp.tanh(weights[None, :] * x) * jnp.pi


if __name__ == "__main__":
    key = jax.random.PRNGKey(0)
    k_w, k_x, k_x2 = jax.random.split(key, 3)

    batch = 2
    state_dim = 4  # CartPole observation dim

    # Deterministic parameter init mirroring torch.nn.init.uniform_(w, -1, 1).
    weights = jax.random.uniform(
        k_w, (state_dim,), dtype=jnp.float32, minval=-1.0, maxval=1.0
    )
    x = jax.random.normal(k_x, (batch, state_dim), dtype=jnp.float32)

    # Small (CartPole-sized) case: single grid step, fully padded tile.
    out = jax.block_until_ready(encoding_layer(x, weights))
    ref = _reference(x, weights)
    assert out.shape == (batch, state_dim)
    assert jnp.allclose(out, ref, atol=1e-5, rtol=1e-5)

    # Larger batch exercises the multi-step tiled/double-buffered path
    # (rows > TB) plus padding of a non-multiple row count.
    big_batch = 70000
    xb = jax.random.normal(k_x2, (big_batch, state_dim), dtype=jnp.float32)
    out_b = jax.block_until_ready(encoding_layer(xb, weights))
    ref_b = _reference(xb, weights)
    assert out_b.shape == (big_batch, state_dim)
    assert jnp.allclose(out_b, ref_b, atol=1e-5, rtol=1e-5)

    print("KERNEL_OK")
</pallas_src>

<mosaic_0001>
module attributes {stable_mosaic.version = 11 : i64} {
  func.func @_encoding_kernel(%arg0: i32, %arg1: memref<1x512xf32, #tpu.memory_space<vmem>>, %arg2: memref<8x512xf32, #tpu.memory_space<vmem>>, %arg3: memref<8x512xf32, #tpu.memory_space<vmem>>) attributes {dimension_semantics = [#tpu.dimension_semantics<parallel>], iteration_bounds = array<i64: 1>, scalar_prefetch = 0 : i64, scratch_operands = 0 : i64, tpu.core_type = #tpu.core_type<tc>, window_params = [{pipeline_mode = #tpu.pipeline_mode<synchronous>, transform_indices = @transform_0, window_bounds = array<i64: 1, 512>}, {transform_indices = @transform_1, window_bounds = array<i64: 8, 512>}, {transform_indices = @transform_2, window_bounds = array<i64: 8, 512>}]} {
    %c0 = arith.constant 0 : index
    %c0_0 = arith.constant 0 : index
    %0 = vector.load %arg1[%c0, %c0_0] : memref<1x512xf32, #tpu.memory_space<vmem>>, vector<1x512xf32>
    %c0_1 = arith.constant 0 : index
    %c0_2 = arith.constant 0 : index
    %1 = vector.load %arg2[%c0_1, %c0_2] : memref<8x512xf32, #tpu.memory_space<vmem>>, vector<8x512xf32>
    %2 = vector.broadcast %0 : vector<1x512xf32> to vector<8x512xf32>
    %3 = arith.mulf %2, %1 : vector<8x512xf32>
    %4 = math.tanh %3 : vector<8x512xf32>
    %cst = arith.constant 3.14159274 : f32
    %5 = vector.broadcast %cst : f32 to vector<8x512xf32>
    %6 = arith.mulf %4, %5 : vector<8x512xf32>
    %c0_3 = arith.constant 0 : index
    %c0_4 = arith.constant 0 : index
    %7 = vector.load %arg3[%c0_3, %c0_4] : memref<8x512xf32, #tpu.memory_space<vmem>>, vector<8x512xf32>
    tpu.vector_store %arg3[%c0_3, %c0_4], %6 {strides = array<i32>} : memref<8x512xf32, #tpu.memory_space<vmem>>, vector<8x512xf32>,
    return
  }
  func.func @transform_0(%arg0: i32) -> (i32, i32) {
    %c0_i32 = arith.constant 0 : i32
    %c0_i32_0 = arith.constant 0 : i32
    %c0_i32_1 = arith.constant 0 : i32
    return %c0_i32, %c0_i32_0 : i32, i32
  }
  func.func @transform_1(%arg0: i32) -> (i32, i32) {
    %c0_i32 = arith.constant 0 : i32
    %c0_i32_0 = arith.constant 0 : i32
    return %arg0, %c0_i32 : i32, i32
  }
  func.func @transform_2(%arg0: i32) -> (i32, i32) {
    %c0_i32 = arith.constant 0 : i32
    %c0_i32_0 = arith.constant 0 : i32
    return %arg0, %c0_i32 : i32, i32
  }
}

</mosaic_0001>

<llo_original>
// kernel: tpu_custom_call.1
$region0: #{tpu_custom_call.1}
  #allocation0 [shape = 'u32[]', space=smem, size = 0x4, offset = 0x4, fixed_abs, tag = 'smem constant byte address 0x4 - core index']
  #allocation1 [shape = 'u32[144,128]{1,0:T(1,128)}', space=vmem, size = 0x12000, scoped, tag = 'internal scratch']
  %s0 = inlined_call_operand.hbm [shape: f32[1,512], index: 0, kind: input, shape index: {}]
  %s1 = inlined_call_operand.hbm [shape: f32[8,512], index: 1, kind: input, shape index: {}]
  %s2 = inlined_call_operand.hbm [shape: f32[8,512], index: 2, kind: output, shape index: {}]
  %s3 = sld [smem:[#allocation0]]
  $region26: #{tpu_custom_call.1} parent=0
    _
  %s5 = ssub.s32 1, %s3
  %s6 = scalar_select 0, %s5, %s3
  $region1: #{tpu_custom_call.1} parent=0
    #allocation2 [shape = 'u8[2048]{0}', space=vmem, size = 0x800, scoped, tag = 'input window, operand 0, single buffered']
    #allocation3 [shape = 's32[1]{0}', space=sflag, size = 0x4, scoped, tag = 'scoped memory for tpu_custom_call.1']
    #allocation4 [shape = 's32[1]{0}', space=sflag, size = 0x4, scoped, tag = 'scoped memory for tpu_custom_call.1']
    #allocation5 [shape = 'u8[16384]{0}', space=vmem, size = 0x4000, scoped, tag = 'input window, operand 1, single buffered']
    #allocation6 [shape = 's32[1]{0}', space=sflag, size = 0x4, scoped, tag = 'scoped memory for tpu_custom_call.1']
    #allocation7 [shape = 'u8[16384]{0}', space=vmem, size = 0x4000, scoped, tag = 'output window, operand 0, single buffered']
    %7 = vsyncpa [#allocation3], 0
    %8 = vsyncpa [#allocation6], 0
    %9 = vsyncpa [#allocation4], 0
    // Predicated region
    $region2: #{tpu_custom_call.1} parent=1 // pred_check
      _
    $region3: #{tpu_custom_call.1} parent=1 // pred_check_branch
      %11 = sbr.rel (0) target = $region5
    $region4: #{tpu_custom_call.1} parent=1 // pred_region
      %s13 = ssub.s32 64, 64
      %14 = vsyncadd [#allocation3], %s13
      %s16 = sshll.u32 [#allocation2], 4
      %s17 = int_to_ptr.vmem [resolvable:$true] %s16
      %19 = dma.hbm_to_vmem [thread:$0]  %s0, 64, %s17, [#allocation3]
    $region5: #{tpu_custom_call.1} parent=1 // pred_fallthru
      _
    // Predicated region
    $region6: #{tpu_custom_call.1} parent=1 // pred_check
      _
    $region7: #{tpu_custom_call.1} parent=1 // pred_check_branch
      %21 = sbr.rel (0) target = $region9
    $region8: #{tpu_custom_call.1} parent=1 // pred_region
      %s23 = ssub.s32 512, 512
      %24 = vsyncadd [#allocation6], %s23
      %s26 = sshll.u32 [#allocation5], 4
      %s27 = int_to_ptr.vmem [resolvable:$true] %s26
      %29 = dma.hbm_to_vmem [thread:$0]  %s1, 512, %s27, [#allocation6]
    $region9: #{tpu_custom_call.1} parent=1 // pred_fallthru
      _
    // Predicated region
    $region10: #{tpu_custom_call.1} parent=1 // pred_check
      _
    $region11: #{tpu_custom_call.1} parent=1 // pred_check_branch
      %31 = sbr.rel (0) target = $region13
    $region12: #{tpu_custom_call.1} parent=1 // pred_region
      %32 = dma.done [#allocation3], 64
    $region13: #{tpu_custom_call.1} parent=1 // pred_fallthru
      _
    // Predicated region
    $region14: #{tpu_custom_call.1} parent=1 // pred_check
      _
    $region15: #{tpu_custom_call.1} parent=1 // pred_check_branch
      %34 = sbr.rel (0) target = $region17
    $region16: #{tpu_custom_call.1} parent=1 // pred_region
      %35 = dma.done [#allocation6], 512
    $region17: #{tpu_custom_call.1} parent=1 // pred_fallthru
      _
    %v36 = vld [vmem:[#allocation2] sm:$0xf]
    %v37 = vld [vmem:[#allocation5] sm:$0xff]
    %v38 = vld [vmem:[#allocation5 + $0x8] sm:$0xff]
    %v39 = vld [vmem:[#allocation5 + $0x10] sm:$0xff]
    %v40 = vld [vmem:[#allocation5 + $0x18] sm:$0xff]
    %v42 = vlaneseq
    %v43 = vshrl.u32 %v42, 7
    %v44 = vsub.s32 0, %v43
    %v45 = vrot.slane %v36, %v44
    %v46 = vlaneseq
    %v47 = vshrl.u32 %v46, 7
    %v48 = vsub.s32 1, %v47
    %v49 = vrot.slane %v36, %v48
    %v50 = vlaneseq
    %v51 = vshrl.u32 %v50, 7
    %v52 = vsub.s32 2, %v51
    %v53 = vrot.slane %v36, %v52
    %v54 = vlaneseq
    %v55 = vshrl.u32 %v54, 7
    %v56 = vsub.s32 3, %v55
    %v57 = vrot.slane %v36, %v56
    %v62 = vmul.f32 %v45, %v37
    %v63 = vmul.f32 %v49, %v38
    %v64 = vmul.f32 %v53, %v39
    %v65 = vmul.f32 %v57, %v40
    %v66 = vtanh.pop %v62
    %v67 = vtanh.pop %v63
    %v68 = vtanh.pop %v64
    %v69 = vtanh.pop %v65
    %v70 = vmul.f32 %v66, 3.1415927
    %v71 = vmul.f32 %v67, 3.1415927
    %v72 = vmul.f32 %v68, 3.1415927
    %v73 = vmul.f32 %v69, 3.1415927
    %74 = vst [vmem:[#allocation7] sm:$0xff] %v70
    %75 = vst [vmem:[#allocation7 + $0x8] sm:$0xff] %v71
    %76 = vst [vmem:[#allocation7 + $0x10] sm:$0xff] %v72
    %77 = vst [vmem:[#allocation7 + $0x18] sm:$0xff] %v73
    // Predicated region
    $region18: #{tpu_custom_call.1} parent=1 // pred_check
      _
    $region19: #{tpu_custom_call.1} parent=1 // pred_check_branch
      %79 = sbr.rel (0) target = $region21
    $region20: #{tpu_custom_call.1} parent=1 // pred_region
      %s81 = ssub.s32 512, 512
      %82 = vsyncadd [#allocation4], %s81
      %s84 = sshll.u32 [#allocation7], 4
      %s85 = int_to_ptr.vmem [resolvable:$true] %s84
      %87 = dma.vmem_to_hbm [thread:$0]  %s85, 512, %s2, [#allocation4]
    $region21: #{tpu_custom_call.1} parent=1 // pred_fallthru
      _
    // Predicated region
    $region22: #{tpu_custom_call.1} parent=1 // pred_check
      _
    $region23: #{tpu_custom_call.1} parent=1 // pred_check_branch
      %89 = sbr.rel (0) target = $region25
    $region24: #{tpu_custom_call.1} parent=1 // pred_region
      %90 = dma.done [#allocation4], 512
    $region25: #{tpu_custom_call.1} parent=1 // pred_fallthru
      _
    %91 = vsyncpa [#allocation3], 1
    %92 = vsyncpa [#allocation6], 1
    %93 = vsyncpa [#allocation4], 1

</llo_original>
